<compile_context>
chip_gen: v7x
topology: tpu7x:2x2x1
jax: 0.10.0
libtpu: 0.0.40
codegen_flags: <defaults>
</compile_context>

<pallas_src>
import functools
import math

import jax
import jax.numpy as jnp
from jax import lax
from jax.experimental import pallas as pl
from jax.experimental.pallas import tpu as pltpu


def _bilinear_coeffs(out_size, in_size):
    """PyTorch nn.Upsample(mode='bilinear', align_corners=False) coefficients
    (used only by the pure-JAX reference)."""
    scale = in_size / out_size
    i0s, i1s, w0s, w1s = [], [], [], []
    for o in range(out_size):
        src = (o + 0.5) * scale - 0.5
        src = max(src, 0.0)
        i0 = min(int(math.floor(src)), in_size - 1)
        i1 = min(i0 + 1, in_size - 1)
        l1 = src - i0
        i0s.append(i0); i1s.append(i1); w0s.append(1.0 - l1); w1s.append(l1)
    return i0s, i1s, w0s, w1s


def _seb_kernel(x1_ref, x2_ref, w_ref, b_ref, o_ref, *, TH, H, W, Cin, Cout):
    # x1_ref : (1, 2, 2, TH, W, Cout)  fine feature, parity-split (hpar, wpar)
    # x2_ref : (1, H, W, Cin)          coarse feature (whole image, NHWC)
    # w_ref  : (9*Cin, Cout)           conv weight, taps (dy, dx, ci) folded into K
    # b_ref  : (1, Cout)               conv bias (f32)
    # o_ref  : (1, 2, 2, TH, W, Cout)
    band = pl.program_id(1)
    nbands = pl.num_programs(1)
    r0 = band * TH                       # first conv-output row of this band

    # ---- gather x2 rows for this band: TH core rows + 2 halo rows per side
    #      (1 because the upsample needs one extra conv row on each side, and
    #      1 more because that conv row needs its own input neighbours).
    #      Out-of-image rows / columns are zero (conv padding=1).
    core = x2_ref[0, pl.ds(r0, TH), :, :]                           # (TH, W, Cin)
    top = x2_ref[0, pl.ds(jnp.maximum(r0 - 2, 0), 2), :, :]         # (2,  W, Cin)
    bot = x2_ref[0, pl.ds(jnp.minimum(r0 + TH, H - 2), 2), :, :]    # (2,  W, Cin)
    top = jnp.where(band > 0, top, jnp.zeros_like(top))
    bot = jnp.where(band < nbands - 1, bot, jnp.zeros_like(bot))
    x2_band = jnp.concatenate([top, core, bot], axis=0)             # (TH+4, W, Cin)
    zcol = jnp.zeros((TH + 4, 1, Cin), x2_band.dtype)
    x2p = jnp.concatenate([zcol, x2_band, zcol], axis=1)            # (TH+4, W+2, Cin)

    # ---- 3x3 conv for conv rows r0-1 .. r0+TH (core + 1 halo conv row per
    #      side) as a single im2col matmul on the MXU ----------------------
    slabs = [x2p[dy:dy + TH + 2, dx:dx + W, :]
             for dy in range(3) for dx in range(3)]
    patches = jnp.concatenate(slabs, axis=-1)                       # (TH+2, W, 9*Cin)
    patches = patches.reshape((TH + 2) * W, 9 * Cin)
    acc = jnp.dot(patches, w_ref[...], preferred_element_type=jnp.float32)
    acc = acc + b_ref[...]                                          # (1, Cout) broadcast
    c_ext = acc.reshape(TH + 2, W, Cout)        # f32, conv rows r0-1 .. r0+TH

    # ---- 2x bilinear upsample (align_corners=False), vectorized even/odd --
    # out[2k]   = 0.75*c[k] + 0.25*c[k-1]   (clamped at the image border)
    # out[2k+1] = 0.75*c[k] + 0.25*c[k+1]   (clamped at the image border)
    c = c_ext[1:TH + 1]                                             # rows r0 .. r0+TH-1
    top_nb = jnp.where(band == 0, c_ext[1:2], c_ext[0:1])           # clamp at image top
    bot_nb = jnp.where(band == nbands - 1, c_ext[TH:TH + 1], c_ext[TH + 1:TH + 2])
    c_up = jnp.concatenate([top_nb, c_ext[1:TH]], axis=0)           # row k-1
    c_dn = jnp.concatenate([c_ext[2:TH + 1], bot_nb], axis=0)       # row k+1
    t0 = 0.75 * c + 0.25 * c_up             # output rows 2k   (hpar = 0)
    t1 = 0.75 * c + 0.25 * c_dn             # output rows 2k+1 (hpar = 1)

    def wpass(t):
        t_lf = jnp.concatenate([t[:, :1, :], t[:, :-1, :]], axis=1)  # col j-1 (clamped)
        t_rt = jnp.concatenate([t[:, 1:, :], t[:, -1:, :]], axis=1)  # col j+1 (clamped)
        return 0.75 * t + 0.25 * t_lf, 0.75 * t + 0.25 * t_rt

    u00, u01 = wpass(t0)
    u10, u11 = wpass(t1)

    # ---- gate with x1 and store (parity-split => plain elementwise stores) -
    odt = o_ref.dtype
    o_ref[0, 0, 0] = (x1_ref[0, 0, 0] * u00).astype(odt)
    o_ref[0, 0, 1] = (x1_ref[0, 0, 1] * u01).astype(odt)
    o_ref[0, 1, 0] = (x1_ref[0, 1, 0] * u10).astype(odt)
    o_ref[0, 1, 1] = (x1_ref[0, 1, 1] * u11).astype(odt)


def _pick_band_rows(H, W, Cout, itemsize, budget_bytes=2 << 20):
    """Largest divisor of H whose x1/out block (2*2*TH*W*Cout) fits the budget."""
    divisors = [d for d in range(1, H + 1) if H % d == 0 and (d >= 2 or d == H)]
    fitting = [d for d in divisors if 4 * d * W * Cout * itemsize <= budget_bytes]
    return max(fitting) if fitting else min(divisors)


def seb_forward(x1_nchw, x2_nchw, weight_oihw, bias, band_rows=None):
    """x1: (N, Cout, 2H, 2W), x2: (N, Cin, H, W)  ->  (N, Cout, 2H, 2W)."""
    N, Cin, H, W = x2_nchw.shape
    Cout = weight_oihw.shape[0]
    H2, W2 = 2 * H, 2 * W
    assert x1_nchw.shape == (N, Cout, H2, W2)
    assert H >= 2 and W >= 2

    out_dtype = x1_nchw.dtype
    if band_rows is None:
        band_rows = _pick_band_rows(H, W, Cout, jnp.dtype(out_dtype).itemsize)
    TH = int(band_rows)
    assert H % TH == 0 and (TH >= 2 or TH == H)
    nbands = H // TH

    # x1 / out in parity-split layout (n, hpar, wpar, h, w, c): the single
    # boundary transpose also de-interleaves the 2x upsample parities, so the
    # kernel does no interleaving at all.  (Same HBM cost as a plain NHWC
    # transpose.)
    x1_split = jnp.transpose(
        x1_nchw.reshape(N, Cout, H, 2, W, 2), (0, 3, 5, 2, 4, 1))
    # x2: NCHW -> NHWC (channels minor -> conv becomes one MXU matmul).
    x2_nhwc = jnp.transpose(x2_nchw, (0, 2, 3, 1))
    # Conv weight OIHW -> (dy, dx, ci, co) -> (9*Cin, Cout); matches im2col order.
    w = jnp.transpose(weight_oihw, (2, 3, 1, 0)).reshape(9 * Cin, Cout)
    bvec = bias.reshape(1, Cout).astype(jnp.float32)

    kern = functools.partial(_seb_kernel, TH=TH, H=H, W=W, Cin=Cin, Cout=Cout)
    out_split = pl.pallas_call(
        kern,
        out_shape=jax.ShapeDtypeStruct((N, 2, 2, H, W, Cout), out_dtype),
        grid_spec=pltpu.PrefetchScalarGridSpec(
            num_scalar_prefetch=0,
            grid=(N, nbands),
            in_specs=[
                pl.BlockSpec((1, 2, 2, TH, W, Cout),
                             lambda n, h: (n, 0, 0, h, 0, 0)),
                pl.BlockSpec((1, H, W, Cin), lambda n, h: (n, 0, 0, 0)),
                pl.BlockSpec((9 * Cin, Cout), lambda n, h: (0, 0)),
                pl.BlockSpec((1, Cout), lambda n, h: (0, 0)),
            ],
            out_specs=pl.BlockSpec((1, 2, 2, TH, W, Cout),
                                   lambda n, h: (n, 0, 0, h, 0, 0)),
        ),
        compiler_params=pltpu.CompilerParams(
            dimension_semantics=("parallel", "parallel"),
            vmem_limit_bytes=32 * 1024 * 1024),
    )(x1_split, x2_nhwc, w, bvec)

    # (n, hpar, wpar, h, w, c) -> NCHW
    out = jnp.transpose(out_split, (0, 5, 3, 1, 4, 2)).reshape(N, Cout, H2, W2)
    return out


def seb_reference(x1, x2, weight, bias):
    """Pure-JAX reference matching PyTorch semantics (NCHW)."""
    conv = lax.conv_general_dilated(
        x2.astype(jnp.float32), weight.astype(jnp.float32),
        window_strides=(1, 1), padding=((1, 1), (1, 1)),
        dimension_numbers=('NCHW', 'OIHW', 'NCHW'))
    conv = conv + bias[None, :, None, None]
    _, _, H, W = conv.shape
    i0h, i1h, w0h, w1h = _bilinear_coeffs(2 * H, H)
    i0w, i1w, w0w, w1w = _bilinear_coeffs(2 * W, W)
    t = (jnp.asarray(w0h)[None, None, :, None] * conv[:, :, jnp.asarray(i0h), :]
         + jnp.asarray(w1h)[None, None, :, None] * conv[:, :, jnp.asarray(i1h), :])
    u = (jnp.asarray(w0w)[None, None, None, :] * t[:, :, :, jnp.asarray(i0w)]
         + jnp.asarray(w1w)[None, None, None, :] * t[:, :, :, jnp.asarray(i1w)])
    return x1 * u


if __name__ == "__main__":
    # Small shapes consistent with SEB: x2 is the coarse feature, x1 the fine one.
    N, Cin, Cout, H, W = 2, 4, 8, 8, 8

    key = jax.random.PRNGKey(0)
    k1, k2, k3, k4 = jax.random.split(key, 4)
    x1 = jax.random.normal(k1, (N, Cout, 2 * H, 2 * W), jnp.float32)
    x2 = jax.random.normal(k2, (N, Cin, H, W), jnp.float32)
    weight = 0.1 * jax.random.normal(k3, (Cout, Cin, 3, 3), jnp.float32)
    bias = 0.05 * jax.random.normal(k4, (Cout,), jnp.float32)

    # band_rows=4 -> 2 row-bands per image, exercising the halo/clamp paths.
    out = jax.block_until_ready(seb_forward(x1, x2, weight, bias, band_rows=4))
    ref = jax.block_until_ready(seb_reference(x1, x2, weight, bias))
    if not jnp.allclose(out, ref, atol=1e-4, rtol=1e-4):
        raise AssertionError("Pallas SEB kernel does not match reference")

    print("KERNEL_OK")
</pallas_src>

<mosaic_0001>
module attributes {stable_mosaic.version = 11 : i64} {
  func.func @_seb_kernel(%arg0: i32, %arg1: i32, %arg2: memref<1x2x2x4x8x8xf32, #tpu.memory_space<vmem>>, %arg3: memref<1x8x8x4xf32, #tpu.memory_space<vmem>>, %arg4: memref<36x8xf32, #tpu.memory_space<vmem>>, %arg5: memref<1x8xf32, #tpu.memory_space<vmem>>, %arg6: memref<1x2x2x4x8x8xf32, #tpu.memory_space<vmem>>) attributes {dimension_semantics = [#tpu.dimension_semantics<parallel>, #tpu.dimension_semantics<parallel>], iteration_bounds = array<i64: 2, 2>, scalar_prefetch = 0 : i64, scratch_operands = 0 : i64, tpu.core_type = #tpu.core_type<tc>, window_params = [{transform_indices = @transform_0, window_bounds = array<i64: 1, 2, 2, 4, 8, 8>}, {transform_indices = @transform_1, window_bounds = array<i64: 1, 8, 8, 4>}, {pipeline_mode = #tpu.pipeline_mode<synchronous>, transform_indices = @transform_2, window_bounds = array<i64: 36, 8>}, {pipeline_mode = #tpu.pipeline_mode<synchronous>, transform_indices = @transform_3, window_bounds = array<i64: 1, 8>}, {transform_indices = @transform_4, window_bounds = array<i64: 1, 2, 2, 4, 8, 8>}]} {
    %c4_i32 = arith.constant 4 : i32
    %0 = arith.muli %arg1, %c4_i32 : i32
    %c0 = arith.constant 0 : index
    %1 = arith.index_cast %0 : i32 to index
    %c0_0 = arith.constant 0 : index
    %c0_1 = arith.constant 0 : index
    %2 = vector.load %arg3[%c0, %1, %c0_0, %c0_1] : memref<1x8x8x4xf32, #tpu.memory_space<vmem>>, vector<1x4x8x4xf32>
    %3 = vector.shape_cast %2 : vector<1x4x8x4xf32> to vector<4x8x4xf32>
    %c2_i32 = arith.constant 2 : i32
    %4 = arith.subi %0, %c2_i32 : i32
    %c0_i32 = arith.constant 0 : i32
    %5 = arith.maxsi %4, %c0_i32 : i32
    %c0_2 = arith.constant 0 : index
    %6 = arith.index_cast %5 : i32 to index
    %c0_3 = arith.constant 0 : index
    %c0_4 = arith.constant 0 : index
    %7 = vector.load %arg3[%c0_2, %6, %c0_3, %c0_4] : memref<1x8x8x4xf32, #tpu.memory_space<vmem>>, vector<1x2x8x4xf32>
    %8 = vector.shape_cast %7 : vector<1x2x8x4xf32> to vector<2x8x4xf32>
    %c4_i32_5 = arith.constant 4 : i32
    %9 = arith.addi %0, %c4_i32_5 : i32
    %c6_i32 = arith.constant 6 : i32
    %10 = arith.minsi %9, %c6_i32 : i32
    %c0_6 = arith.constant 0 : index
    %11 = arith.index_cast %10 : i32 to index
    %c0_7 = arith.constant 0 : index
    %c0_8 = arith.constant 0 : index
    %12 = vector.load %arg3[%c0_6, %11, %c0_7, %c0_8] : memref<1x8x8x4xf32, #tpu.memory_space<vmem>>, vector<1x2x8x4xf32>
    %13 = vector.shape_cast %12 : vector<1x2x8x4xf32> to vector<2x8x4xf32>
    %c0_i32_9 = arith.constant 0 : i32
    %14 = arith.cmpi sgt, %arg1, %c0_i32_9 : i32
    %cst = arith.constant 0.000000e+00 : f32
    %15 = vector.broadcast %cst : f32 to vector<2x8x4xf32>
    %16 = arith.select %14, %8, %15 : vector<2x8x4xf32>
    %c1_i32 = arith.constant 1 : i32
    %17 = arith.cmpi slt, %arg1, %c1_i32 : i32
    %cst_10 = arith.constant 0.000000e+00 : f32
    %18 = vector.broadcast %cst_10 : f32 to vector<2x8x4xf32>
    %19 = arith.select %17, %13, %18 : vector<2x8x4xf32>
    %20 = tpu.concatenate %16, %3, %19 in 0 : vector<2x8x4xf32>, vector<4x8x4xf32>, vector<2x8x4xf32> -> vector<8x8x4xf32>
    %cst_11 = arith.constant 0.000000e+00 : f32
    %21 = vector.broadcast %cst_11 : f32 to vector<8x1x4xf32>
    %22 = tpu.concatenate %21, %20, %21 in 1 : vector<8x1x4xf32>, vector<8x8x4xf32>, vector<8x1x4xf32> -> vector<8x10x4xf32>
    %23 = vector.extract_strided_slice %22 {offsets = [0, 0, 0], sizes = [6, 8, 4], strides = [1, 1, 1]} : vector<8x10x4xf32> to vector<6x8x4xf32>
    %24 = vector.extract_strided_slice %22 {offsets = [0, 1, 0], sizes = [6, 8, 4], strides = [1, 1, 1]} : vector<8x10x4xf32> to vector<6x8x4xf32>
    %25 = vector.extract_strided_slice %22 {offsets = [0, 2, 0], sizes = [6, 8, 4], strides = [1, 1, 1]} : vector<8x10x4xf32> to vector<6x8x4xf32>
    %26 = vector.extract_strided_slice %22 {offsets = [1, 0, 0], sizes = [6, 8, 4], strides = [1, 1, 1]} : vector<8x10x4xf32> to vector<6x8x4xf32>
    %27 = vector.extract_strided_slice %22 {offsets = [1, 1, 0], sizes = [6, 8, 4], strides = [1, 1, 1]} : vector<8x10x4xf32> to vector<6x8x4xf32>
    %28 = vector.extract_strided_slice %22 {offsets = [1, 2, 0], sizes = [6, 8, 4], strides = [1, 1, 1]} : vector<8x10x4xf32> to vector<6x8x4xf32>
    %29 = vector.extract_strided_slice %22 {offsets = [2, 0, 0], sizes = [6, 8, 4], strides = [1, 1, 1]} : vector<8x10x4xf32> to vector<6x8x4xf32>
    %30 = vector.extract_strided_slice %22 {offsets = [2, 1, 0], sizes = [6, 8, 4], strides = [1, 1, 1]} : vector<8x10x4xf32> to vector<6x8x4xf32>
    %31 = vector.extract_strided_slice %22 {offsets = [2, 2, 0], sizes = [6, 8, 4], strides = [1, 1, 1]} : vector<8x10x4xf32> to vector<6x8x4xf32>
    %32 = tpu.concatenate %23, %24, %25, %26, %27, %28, %29, %30, %31 in 2 : vector<6x8x4xf32>, vector<6x8x4xf32>, vector<6x8x4xf32>, vector<6x8x4xf32>, vector<6x8x4xf32>, vector<6x8x4xf32>, vector<6x8x4xf32>, vector<6x8x4xf32>, vector<6x8x4xf32> -> vector<6x8x36xf32>
    %33 = vector.shape_cast %32 : vector<6x8x36xf32> to vector<48x36xf32>
    %c0_12 = arith.constant 0 : index
    %c0_13 = arith.constant 0 : index
    %34 = vector.load %arg4[%c0_12, %c0_13] : memref<36x8xf32, #tpu.memory_space<vmem>>, vector<36x8xf32>
    %cst_14 = arith.constant dense<0.000000e+00> : vector<48x8xf32>
    %35 = tpu.matmul %33, %34, %cst_14 {dimension_numbers = #tpu.dot_dimension_numbers<[1], [0], [0], [1], [0, 0, 1, 1], [], []>} : vector<48x36xf32>, vector<36x8xf32>, vector<48x8xf32> -> vector<48x8xf32>
    %c0_15 = arith.constant 0 : index
    %c0_16 = arith.constant 0 : index
    %36 = vector.load %arg5[%c0_15, %c0_16] : memref<1x8xf32, #tpu.memory_space<vmem>>, vector<1x8xf32>
    %37 = vector.broadcast %36 : vector<1x8xf32> to vector<48x8xf32>
    %38 = arith.addf %35, %37 : vector<48x8xf32>
    %39 = vector.shape_cast %38 : vector<48x8xf32> to vector<6x8x8xf32>
    %40 = vector.extract_strided_slice %39 {offsets = [1, 0, 0], sizes = [4, 8, 8], strides = [1, 1, 1]} : vector<6x8x8xf32> to vector<4x8x8xf32>
    %c0_i32_17 = arith.constant 0 : i32
    %41 = arith.cmpi eq, %arg1, %c0_i32_17 : i32
    %42 = vector.extract_strided_slice %39 {offsets = [1, 0, 0], sizes = [1, 8, 8], strides = [1, 1, 1]} : vector<6x8x8xf32> to vector<1x8x8xf32>
    %43 = vector.extract_strided_slice %39 {offsets = [0, 0, 0], sizes = [1, 8, 8], strides = [1, 1, 1]} : vector<6x8x8xf32> to vector<1x8x8xf32>
    %44 = arith.select %41, %42, %43 : vector<1x8x8xf32>
    %c1_i32_18 = arith.constant 1 : i32
    %45 = arith.cmpi eq, %arg1, %c1_i32_18 : i32
    %46 = vector.extract_strided_slice %39 {offsets = [4, 0, 0], sizes = [1, 8, 8], strides = [1, 1, 1]} : vector<6x8x8xf32> to vector<1x8x8xf32>
    %47 = vector.extract_strided_slice %39 {offsets = [5, 0, 0], sizes = [1, 8, 8], strides = [1, 1, 1]} : vector<6x8x8xf32> to vector<1x8x8xf32>
    %48 = arith.select %45, %46, %47 : vector<1x8x8xf32>
    %49 = vector.extract_strided_slice %39 {offsets = [1, 0, 0], sizes = [3, 8, 8], strides = [1, 1, 1]} : vector<6x8x8xf32> to vector<3x8x8xf32>
    %50 = tpu.concatenate %44, %49 in 0 : vector<1x8x8xf32>, vector<3x8x8xf32> -> vector<4x8x8xf32>
    %51 = vector.extract_strided_slice %39 {offsets = [2, 0, 0], sizes = [3, 8, 8], strides = [1, 1, 1]} : vector<6x8x8xf32> to vector<3x8x8xf32>
    %52 = tpu.concatenate %51, %48 in 0 : vector<3x8x8xf32>, vector<1x8x8xf32> -> vector<4x8x8xf32>
    %cst_19 = arith.constant 7.500000e-01 : f32
    %53 = vector.broadcast %cst_19 : f32 to vector<4x8x8xf32>
    %54 = arith.mulf %53, %40 : vector<4x8x8xf32>
    %cst_20 = arith.constant 2.500000e-01 : f32
    %55 = vector.broadcast %cst_20 : f32 to vector<4x8x8xf32>
    %56 = arith.mulf %55, %50 : vector<4x8x8xf32>
    %57 = arith.addf %54, %56 : vector<4x8x8xf32>
    %cst_21 = arith.constant 7.500000e-01 : f32
    %58 = vector.broadcast %cst_21 : f32 to vector<4x8x8xf32>
    %59 = arith.mulf %58, %40 : vector<4x8x8xf32>
    %cst_22 = arith.constant 2.500000e-01 : f32
    %60 = vector.broadcast %cst_22 : f32 to vector<4x8x8xf32>
    %61 = arith.mulf %60, %52 : vector<4x8x8xf32>
    %62 = arith.addf %59, %61 : vector<4x8x8xf32>
    %63 = vector.extract_strided_slice %57 {offsets = [0, 0, 0], sizes = [4, 1, 8], strides = [1, 1, 1]} : vector<4x8x8xf32> to vector<4x1x8xf32>
    %64 = vector.extract_strided_slice %57 {offsets = [0, 0, 0], sizes = [4, 7, 8], strides = [1, 1, 1]} : vector<4x8x8xf32> to vector<4x7x8xf32>
    %65 = tpu.concatenate %63, %64 in 1 : vector<4x1x8xf32>, vector<4x7x8xf32> -> vector<4x8x8xf32>
    %66 = vector.extract_strided_slice %57 {offsets = [0, 1, 0], sizes = [4, 7, 8], strides = [1, 1, 1]} : vector<4x8x8xf32> to vector<4x7x8xf32>
    %67 = vector.extract_strided_slice %57 {offsets = [0, 7, 0], sizes = [4, 1, 8], strides = [1, 1, 1]} : vector<4x8x8xf32> to vector<4x1x8xf32>
    %68 = tpu.concatenate %66, %67 in 1 : vector<4x7x8xf32>, vector<4x1x8xf32> -> vector<4x8x8xf32>
    %cst_23 = arith.constant 7.500000e-01 : f32
    %69 = vector.broadcast %cst_23 : f32 to vector<4x8x8xf32>
    %70 = arith.mulf %69, %57 : vector<4x8x8xf32>
    %cst_24 = arith.constant 2.500000e-01 : f32
    %71 = vector.broadcast %cst_24 : f32 to vector<4x8x8xf32>
    %72 = arith.mulf %71, %65 : vector<4x8x8xf32>
    %73 = arith.addf %70, %72 : vector<4x8x8xf32>
    %cst_25 = arith.constant 7.500000e-01 : f32
    %74 = vector.broadcast %cst_25 : f32 to vector<4x8x8xf32>
    %75 = arith.mulf %74, %57 : vector<4x8x8xf32>
    %cst_26 = arith.constant 2.500000e-01 : f32
    %76 = vector.broadcast %cst_26 : f32 to vector<4x8x8xf32>
    %77 = arith.mulf %76, %68 : vector<4x8x8xf32>
    %78 = arith.addf %75, %77 : vector<4x8x8xf32>
    %79 = vector.extract_strided_slice %62 {offsets = [0, 0, 0], sizes = [4, 1, 8], strides = [1, 1, 1]} : vector<4x8x8xf32> to vector<4x1x8xf32>
    %80 = vector.extract_strided_slice %62 {offsets = [0, 0, 0], sizes = [4, 7, 8], strides = [1, 1, 1]} : vector<4x8x8xf32> to vector<4x7x8xf32>
    %81 = tpu.concatenate %79, %80 in 1 : vector<4x1x8xf32>, vector<4x7x8xf32> -> vector<4x8x8xf32>
    %82 = vector.extract_strided_slice %62 {offsets = [0, 1, 0], sizes = [4, 7, 8], strides = [1, 1, 1]} : vector<4x8x8xf32> to vector<4x7x8xf32>
    %83 = vector.extract_strided_slice %62 {offsets = [0, 7, 0], sizes = [4, 1, 8], strides = [1, 1, 1]} : vector<4x8x8xf32> to vector<4x1x8xf32>
    %84 = tpu.concatenate %82, %83 in 1 : vector<4x7x8xf32>, vector<4x1x8xf32> -> vector<4x8x8xf32>
    %cst_27 = arith.constant 7.500000e-01 : f32
    %85 = vector.broadcast %cst_27 : f32 to vector<4x8x8xf32>
    %86 = arith.mulf %85, %62 : vector<4x8x8xf32>
    %cst_28 = arith.constant 2.500000e-01 : f32
    %87 = vector.broadcast %cst_28 : f32 to vector<4x8x8xf32>
    %88 = arith.mulf %87, %81 : vector<4x8x8xf32>
    %89 = arith.addf %86, %88 : vector<4x8x8xf32>
    %cst_29 = arith.constant 7.500000e-01 : f32
    %90 = vector.broadcast %cst_29 : f32 to vector<4x8x8xf32>
    %91 = arith.mulf %90, %62 : vector<4x8x8xf32>
    %cst_30 = arith.constant 2.500000e-01 : f32
    %92 = vector.broadcast %cst_30 : f32 to vector<4x8x8xf32>
    %93 = arith.mulf %92, %84 : vector<4x8x8xf32>
    %94 = arith.addf %91, %93 : vector<4x8x8xf32>
    %c0_31 = arith.constant 0 : index
    %c0_32 = arith.constant 0 : index
    %c0_33 = arith.constant 0 : index
    %c0_34 = arith.constant 0 : index
    %c0_35 = arith.constant 0 : index
    %c0_36 = arith.constant 0 : index
    %95 = vector.load %arg2[%c0_31, %c0_32, %c0_33, %c0_34, %c0_35, %c0_36] : memref<1x2x2x4x8x8xf32, #tpu.memory_space<vmem>>, vector<1x1x1x4x8x8xf32>
    %96 = vector.shape_cast %95 : vector<1x1x1x4x8x8xf32> to vector<4x8x8xf32>
    %97 = arith.mulf %96, %73 : vector<4x8x8xf32>
    %c0_37 = arith.constant 0 : index
    %c0_38 = arith.constant 0 : index
    %c0_39 = arith.constant 0 : index
    %c0_40 = arith.constant 0 : index
    %c0_41 = arith.constant 0 : index
    %c0_42 = arith.constant 0 : index
    %98 = vector.load %arg6[%c0_37, %c0_38, %c0_39, %c0_40, %c0_41, %c0_42] : memref<1x2x2x4x8x8xf32, #tpu.memory_space<vmem>>, vector<1x1x1x4x8x8xf32>
    %99 = vector.shape_cast %98 : vector<1x1x1x4x8x8xf32> to vector<4x8x8xf32>
    %100 = vector.shape_cast %97 : vector<4x8x8xf32> to vector<1x1x1x4x8x8xf32>
    tpu.vector_store %arg6[%c0_37, %c0_38, %c0_39, %c0_40, %c0_41, %c0_42], %100 {strides = array<i32>} : memref<1x2x2x4x8x8xf32, #tpu.memory_space<vmem>>, vector<1x1x1x4x8x8xf32>,
    %c0_43 = arith.constant 0 : index
    %c0_44 = arith.constant 0 : index
    %c1 = arith.constant 1 : index
    %c0_45 = arith.constant 0 : index
    %c0_46 = arith.constant 0 : index
    %c0_47 = arith.constant 0 : index
    %101 = vector.load %arg2[%c0_43, %c0_44, %c1, %c0_45, %c0_46, %c0_47] : memref<1x2x2x4x8x8xf32, #tpu.memory_space<vmem>>, vector<1x1x1x4x8x8xf32>
    %102 = vector.shape_cast %101 : vector<1x1x1x4x8x8xf32> to vector<4x8x8xf32>
    %103 = arith.mulf %102, %78 : vector<4x8x8xf32>
    %c0_48 = arith.constant 0 : index
    %c0_49 = arith.constant 0 : index
    %c1_50 = arith.constant 1 : index
    %c0_51 = arith.constant 0 : index
    %c0_52 = arith.constant 0 : index
    %c0_53 = arith.constant 0 : index
    %104 = vector.load %arg6[%c0_48, %c0_49, %c1_50, %c0_51, %c0_52, %c0_53] : memref<1x2x2x4x8x8xf32, #tpu.memory_space<vmem>>, vector<1x1x1x4x8x8xf32>
    %105 = vector.shape_cast %104 : vector<1x1x1x4x8x8xf32> to vector<4x8x8xf32>
    %106 = vector.shape_cast %103 : vector<4x8x8xf32> to vector<1x1x1x4x8x8xf32>
    tpu.vector_store %arg6[%c0_48, %c0_49, %c1_50, %c0_51, %c0_52, %c0_53], %106 {strides = array<i32>} : memref<1x2x2x4x8x8xf32, #tpu.memory_space<vmem>>, vector<1x1x1x4x8x8xf32>,
    %c0_54 = arith.constant 0 : index
    %c1_55 = arith.constant 1 : index
    %c0_56 = arith.constant 0 : index
    %c0_57 = arith.constant 0 : index
    %c0_58 = arith.constant 0 : index
    %c0_59 = arith.constant 0 : index
    %107 = vector.load %arg2[%c0_54, %c1_55, %c0_56, %c0_57, %c0_58, %c0_59] : memref<1x2x2x4x8x8xf32, #tpu.memory_space<vmem>>, vector<1x1x1x4x8x8xf32>
    %108 = vector.shape_cast %107 : vector<1x1x1x4x8x8xf32> to vector<4x8x8xf32>
    %109 = arith.mulf %108, %89 : vector<4x8x8xf32>
    %c0_60 = arith.constant 0 : index
    %c1_61 = arith.constant 1 : index
    %c0_62 = arith.constant 0 : index
    %c0_63 = arith.constant 0 : index
    %c0_64 = arith.constant 0 : index
    %c0_65 = arith.constant 0 : index
    %110 = vector.load %arg6[%c0_60, %c1_61, %c0_62, %c0_63, %c0_64, %c0_65] : memref<1x2x2x4x8x8xf32, #tpu.memory_space<vmem>>, vector<1x1x1x4x8x8xf32>
    %111 = vector.shape_cast %110 : vector<1x1x1x4x8x8xf32> to vector<4x8x8xf32>
    %112 = vector.shape_cast %109 : vector<4x8x8xf32> to vector<1x1x1x4x8x8xf32>
    tpu.vector_store %arg6[%c0_60, %c1_61, %c0_62, %c0_63, %c0_64, %c0_65], %112 {strides = array<i32>} : memref<1x2x2x4x8x8xf32, #tpu.memory_space<vmem>>, vector<1x1x1x4x8x8xf32>,
    %c0_66 = arith.constant 0 : index
    %c1_67 = arith.constant 1 : index
    %c1_68 = arith.constant 1 : index
    %c0_69 = arith.constant 0 : index
    %c0_70 = arith.constant 0 : index
    %c0_71 = arith.constant 0 : index
    %113 = vector.load %arg2[%c0_66, %c1_67, %c1_68, %c0_69, %c0_70, %c0_71] : memref<1x2x2x4x8x8xf32, #tpu.memory_space<vmem>>, vector<1x1x1x4x8x8xf32>
    %114 = vector.shape_cast %113 : vector<1x1x1x4x8x8xf32> to vector<4x8x8xf32>
    %115 = arith.mulf %114, %94 : vector<4x8x8xf32>
    %c0_72 = arith.constant 0 : index
    %c1_73 = arith.constant 1 : index
    %c1_74 = arith.constant 1 : index
    %c0_75 = arith.constant 0 : index
    %c0_76 = arith.constant 0 : index
    %c0_77 = arith.constant 0 : index
    %116 = vector.load %arg6[%c0_72, %c1_73, %c1_74, %c0_75, %c0_76, %c0_77] : memref<1x2x2x4x8x8xf32, #tpu.memory_space<vmem>>, vector<1x1x1x4x8x8xf32>
    %117 = vector.shape_cast %116 : vector<1x1x1x4x8x8xf32> to vector<4x8x8xf32>
    %118 = vector.shape_cast %115 : vector<4x8x8xf32> to vector<1x1x1x4x8x8xf32>
    tpu.vector_store %arg6[%c0_72, %c1_73, %c1_74, %c0_75, %c0_76, %c0_77], %118 {strides = array<i32>} : memref<1x2x2x4x8x8xf32, #tpu.memory_space<vmem>>, vector<1x1x1x4x8x8xf32>,
    return
  }
  func.func @transform_0(%arg0: i32, %arg1: i32) -> (i32, i32, i32, i32, i32, i32) {
    %c0_i32 = arith.constant 0 : i32
    %c0_i32_0 = arith.constant 0 : i32
    %c0_i32_1 = arith.constant 0 : i32
    %c0_i32_2 = arith.constant 0 : i32
    %c0_i32_3 = arith.constant 0 : i32
    return %arg0, %c0_i32, %c0_i32_0, %arg1, %c0_i32_1, %c0_i32_2 : i32, i32, i32, i32, i32, i32
  }
  func.func @transform_1(%arg0: i32, %arg1: i32) -> (i32, i32, i32, i32) {
    %c0_i32 = arith.constant 0 : i32
    %c0_i32_0 = arith.constant 0 : i32
    %c0_i32_1 = arith.constant 0 : i32
    %c0_i32_2 = arith.constant 0 : i32
    return %arg0, %c0_i32, %c0_i32_0, %c0_i32_1 : i32, i32, i32, i32
  }
  func.func @transform_2(%arg0: i32, %arg1: i32) -> (i32, i32) {
    %c0_i32 = arith.constant 0 : i32
    %c0_i32_0 = arith.constant 0 : i32
    %c0_i32_1 = arith.constant 0 : i32
    return %c0_i32, %c0_i32_0 : i32, i32
  }
  func.func @transform_3(%arg0: i32, %arg1: i32) -> (i32, i32) {
    %c0_i32 = arith.constant 0 : i32
    %c0_i32_0 = arith.constant 0 : i32
    %c0_i32_1 = arith.constant 0 : i32
    return %c0_i32, %c0_i32_0 : i32, i32
  }
  func.func @transform_4(%arg0: i32, %arg1: i32) -> (i32, i32, i32, i32, i32, i32) {
    %c0_i32 = arith.constant 0 : i32
    %c0_i32_0 = arith.constant 0 : i32
    %c0_i32_1 = arith.constant 0 : i32
    %c0_i32_2 = arith.constant 0 : i32
    %c0_i32_3 = arith.constant 0 : i32
    return %arg0, %c0_i32, %c0_i32_0, %arg1, %c0_i32_1, %c0_i32_2 : i32, i32, i32, i32, i32, i32
  }
}

</mosaic_0001>

<llo_original>
// kernel: tpu_custom_call.1
$region0: #{tpu_custom_call.1}
  #allocation0 [shape = 'u32[]', space=smem, size = 0x4, offset = 0x4, fixed_abs, tag = 'smem constant byte address 0x4 - core index']
  #allocation1 [shape = 'u32[144,128]{1,0:T(1,128)}', space=vmem, size = 0x12000, scoped, tag = 'internal scratch']
  #allocation6 [shape = 's32[]', space=sflag, size = 0x4, offset = 0, fixed_abs, tag = 'sflag constant byte address 0x0 - dummy sync flag']
  #allocation8 [shape = 's32[]', space=sflag, size = 0x4, offset = 0, fixed_abs, tag = 'sflag constant byte address 0x0 - dummy sync flag']
  %s0 = inlined_call_operand.hbm [shape: f32[2,2,2,8,8,8], index: 0, kind: input, shape index: {}]
  %s1 = inlined_call_operand.vmem [shape: f32[2,8,8,4], index: 1, kind: input, shape index: {}]
  %s2 = inlined_call_operand.vmem [shape: f32[36,8], index: 2, kind: input, shape index: {}]
  %s3 = inlined_call_operand.vmem [shape: f32[1,8], index: 3, kind: input, shape index: {}]
  %s4 = inlined_call_operand.hbm [shape: f32[2,2,2,8,8,8], index: 4, kind: output, shape index: {}]
  %s5 = sld [smem:[#allocation0]]
  $region53: #{tpu_custom_call.1} parent=0
    _
  %s7 = ssub.s32 1, %s5
  %s8 = scalar_select 0, %s7, %s5
  $region1: #{tpu_custom_call.1} parent=0
    #allocation2 [shape = 'u8[131072]{0}', space=vmem, size = 0x20000, scoped, tag = 'input window, operand 0']
    #allocation3 [shape = 's32[2]{0}', space=sflag, size = 0x8, scoped, tag = 'scoped memory for tpu_custom_call.1']
    #allocation4 [shape = 's32[2]{0}', space=sflag, size = 0x8, scoped, tag = 'scoped memory for tpu_custom_call.1']
    #allocation5 [shape = 'u8[131072]{0}', space=vmem, size = 0x20000, scoped, tag = 'output window, operand 0']
    %9 = vsyncpa [#allocation3], 0
    %s10 = scalar_lea.sflag [#allocation3], 1
    %11 = vsyncpa %s10, 0
    %12 = vsyncpa [#allocation4], 0
    %s13 = scalar_lea.sflag [#allocation4], 1
    %14 = vsyncpa %s13, 0
    loop: start=0, step=1, limit=6
    $region2: #{tpu_custom_call.1} parent=1 // loop_pre_header
      _
    $region3: #{tpu_custom_call.1} parent=1 // loop_header
      %s16 = sphi 0, %s20
      %p17 = scmp.ge.s32.totalorder %s16, 6
      %s23 = sphi 0, %s35
      %s24 = sphi 0, %s31
      %s25 = sphi 0, %s23
      %s26 = sphi 0, %s24
      %s27 = sphi 0, %s25
      %s28 = sphi 0, %s26
      %s40 = sphi 0, %s42
      %s43 = sphi 0, %s40
      %s44 = sphi 0, %s43
      %s60 = sphi 0, %s44
      %s66 = sphi 0, %s68
      %s69 = sphi 0, %s66
      %s70 = sphi 0, %s69
      %s86 = sphi 0, %s70
      %s90 = sphi 0, %s90
      %s92 = sphi 0, %s90
      %s93 = sphi 0, %s92
      %s107 = sphi 0, %s93
      %s111 = sphi 0, %s111
      %s113 = sphi 0, %s111
      %s114 = sphi 0, %s113
      %s128 = sphi 0, %s114
      %s136 = sphi 0, %s138
      %s139 = sphi 0, %s136
      %s140 = sphi 0, %s139
      %s156 = sphi 0, %s140
    $region4: #{tpu_custom_call.1} parent=1 // loop_header_branch
      %19 = sbr.rel (%p17) target = $region8
    $region5: #{tpu_custom_call.1} parent=1 // loop_body
      %s21 = ssub.s32 %s16, 1
      %s22 = ssub.s32 %s16, 2
      %s29 = sadd.s32 1, %s24
      %p30 = scmp.ge.s32.totalorder %s29, 2
      %s31 = scalar_select %p30, 0, %s29
      %s32 = sadd.s32 1, %s23
      %s33 = scalar_select %p30, %s32, %s23
      %p34 = scmp.ge.s32.totalorder %s33, 2
      %s35 = scalar_select %p34, 0, %s33
      %s36 = ssub.s32 %s23, %s35
      %s37 = ssub.s32 %s24, %s31
      %s38 = sor.u32 %s36, %s37
      %p39 = scmp.eq.s32.totalorder %s38, 0
      %s41 = sadd.s32 %s40, 1
      %s42 = scalar_select %p39, %s40, %s41
      %p45 = pneg %p39
      %p46 = scmp.eq.s32.totalorder %s16, 3
      %p47 = por %p45, %p46
      %p48 = scmp.ne.s32.totalorder %s40, %s43
      %p49 = scmp.eq.s32.totalorder %s16, 0
      %p50 = por %p48, %p49
      %p51 = scmp.ne.s32.totalorder %s40, %s43
      %p52 = scmp.eq.s32.totalorder %s21, 3
      %p53 = por %p51, %p52
      %p54 = scmp.ne.s32.totalorder %s43, %s44
      %p55 = scmp.eq.s32.totalorder %s21, 0
      %p56 = por %p54, %p55
      %p57 = scmp.ne.s32.totalorder %s43, %s44
      %p58 = scmp.eq.s32.totalorder %s22, 3
      %p59 = por %p57, %p58
      %p61 = scmp.ne.s32.totalorder %s44, %s60
      %p62 = scmp.eq.s32.totalorder %s22, 0
      %p63 = por %p61, %p62
      %s64 = ssub.s32 %s23, %s35
      %p65 = scmp.eq.s32.totalorder %s64, 0
      %s67 = sadd.s32 %s66, 1
      %s68 = scalar_select %p65, %s66, %s67
      %p71 = pneg %p65
      %p72 = scmp.eq.s32.totalorder %s16, 3
      %p73 = por %p71, %p72
      %p74 = scmp.ne.s32.totalorder %s66, %s69
      %p75 = scmp.eq.s32.totalorder %s16, 0
      %p76 = por %p74, %p75
      %p77 = scmp.ne.s32.totalorder %s66, %s69
      %p78 = scmp.eq.s32.totalorder %s21, 3
      %p79 = por %p77, %p78
      %p80 = scmp.ne.s32.totalorder %s69, %s70
      %p81 = scmp.eq.s32.totalorder %s21, 0
      %p82 = por %p80, %p81
      %p83 = scmp.ne.s32.totalorder %s69, %s70
      %p84 = scmp.eq.s32.totalorder %s22, 3
      %p85 = por %p83, %p84
      %p87 = scmp.ne.s32.totalorder %s70, %s86
      %p88 = scmp.eq.s32.totalorder %s22, 0
      %p89 = por %p87, %p88
      %s91 = sadd.s32 %s90, 1
      %p94 = scmp.eq.s32.totalorder %s16, 3
      %p95 = scmp.ne.s32.totalorder %s90, %s92
      %p96 = scmp.eq.s32.totalorder %s16, 0
      %p97 = por %p95, %p96
      %p98 = scmp.ne.s32.totalorder %s90, %s92
      %p99 = scmp.eq.s32.totalorder %s21, 3
      %p100 = por %p98, %p99
      %p101 = scmp.ne.s32.totalorder %s92, %s93
      %p102 = scmp.eq.s32.totalorder %s21, 0
      %p103 = por %p101, %p102
      %p104 = scmp.ne.s32.totalorder %s92, %s93
      %p105 = scmp.eq.s32.totalorder %s22, 3
      %p106 = por %p104, %p105
      %p108 = scmp.ne.s32.totalorder %s93, %s107
      %p109 = scmp.eq.s32.totalorder %s22, 0
      %p110 = por %p108, %p109
      %s112 = sadd.s32 %s111, 1
      %p115 = scmp.eq.s32.totalorder %s16, 3
      %p116 = scmp.ne.s32.totalorder %s111, %s113
      %p117 = scmp.eq.s32.totalorder %s16, 0
      %p118 = por %p116, %p117
      %p119 = scmp.ne.s32.totalorder %s111, %s113
      %p120 = scmp.eq.s32.totalorder %s21, 3
      %p121 = por %p119, %p120
      %p122 = scmp.ne.s32.totalorder %s113, %s114
      %p123 = scmp.eq.s32.totalorder %s21, 0
      %p124 = por %p122, %p123
      %p125 = scmp.ne.s32.totalorder %s113, %s114
      %p126 = scmp.eq.s32.totalorder %s22, 3
      %p127 = por %p125, %p126
      %p129 = scmp.ne.s32.totalorder %s114, %s128
      %p130 = scmp.eq.s32.totalorder %s22, 0
      %p131 = por %p129, %p130
      %s132 = ssub.s32 %s23, %s35
      %s133 = ssub.s32 %s24, %s31
      %s134 = sor.u32 %s132, %s133
      %p135 = scmp.eq.s32.totalorder %s134, 0
      %s137 = sadd.s32 %s136, 1
      %s138 = scalar_select %p135, %s136, %s137
      %p141 = pneg %p135
      %p142 = scmp.eq.s32.totalorder %s16, 3
      %p143 = por %p141, %p142
      %p144 = scmp.ne.s32.totalorder %s136, %s139
      %p145 = scmp.eq.s32.totalorder %s16, 0
      %p146 = por %p144, %p145
      %p147 = scmp.ne.s32.totalorder %s136, %s139
      %p148 = scmp.eq.s32.totalorder %s21, 3
      %p149 = por %p147, %p148
      %p150 = scmp.ne.s32.totalorder %s139, %s140
      %p151 = scmp.eq.s32.totalorder %s21, 0
      %p152 = por %p150, %p151
      %p153 = scmp.ne.s32.totalorder %s139, %s140
      %p154 = scmp.eq.s32.totalorder %s22, 3
      %p155 = por %p153, %p154
      %p157 = scmp.ne.s32.totalorder %s140, %s156
      %p158 = scmp.eq.s32.totalorder %s22, 0
      %p159 = por %p157, %p158
      %p160 = scmp.le.s32.totalorder 1, %s16
      %p161 = scmp.lt.s32.totalorder %s16, 5
      %p162 = pnand %p160, %p161
      %p163 = pneg %p162
      // Predicated region
      $region9: #{tpu_custom_call.1} parent=5 // pred_check
        _
      $region10: #{tpu_custom_call.1} parent=5 // pred_check_branch
        %165 = sbr.rel (%p162) target = $region12
      $region11: #{tpu_custom_call.1} parent=5 // pred_region
        %s166 = ssub.s32 %s16, 1
        // Predicated region
        $region13: #{tpu_custom_call.1} parent=11 // pred_check
          %p167 = pneg %p103
        $region14: #{tpu_custom_call.1} parent=11 // pred_check_branch
          %169 = sbr.rel (%p167) target = $region16
        $region15: #{tpu_custom_call.1} parent=11 // pred_region
          _
        $region16: #{tpu_custom_call.1} parent=11 // pred_fallthru
          _
        // Predicated region
        $region17: #{tpu_custom_call.1} parent=11 // pred_check
          %p170 = pneg %p124
        $region18: #{tpu_custom_call.1} parent=11 // pred_check_branch
          %172 = sbr.rel (%p170) target = $region20
        $region19: #{tpu_custom_call.1} parent=11 // pred_region
          _
        $region20: #{tpu_custom_call.1} parent=11 // pred_fallthru
          _
      $region12: #{tpu_custom_call.1} parent=5 // pred_fallthru
        _
      %p173 = scmp.lt.s32.totalorder %s16, 4
      // Predicated region
      $region21: #{tpu_custom_call.1} parent=5 // pred_check
        %p174 = pneg %p173
      $region22: #{tpu_custom_call.1} parent=5 // pred_check_branch
        %176 = sbr.rel (%p174) target = $region24
      $region23: #{tpu_custom_call.1} parent=5 // pred_region
        // Predicated region
        $region25: #{tpu_custom_call.1} parent=23 // pred_check
          %p177 = pneg %p50
        $region26: #{tpu_custom_call.1} parent=23 // pred_check_branch
          %179 = sbr.rel (%p177) target = $region28
        $region27: #{tpu_custom_call.1} parent=23 // pred_region
          #allocation7 [shape = 'u32[6]{0}', space=smem, size = 0x18, scoped, tag = 'DMA stride descriptor']
          %s180 = sand.u32 %s40, 1
          %s181 = scalar_lea.sflag [#allocation3], %s180
          %s182 = sand.u32 %s40, 1
          %s183 = smul.addr %s182, 128
          %s184 = scalar_lea.vmem [#allocation2], %s183
          %s185 = smul.u32 4, %s24
          %s187 = ssub.s32 2048, 2048
          %188 = vsyncadd %s181, %s187
          %s189 = smul.addr %s23, 32
          %s190 = sadd.s32 %s185, %s189
          %s191 = smul.addr %s190, 128
          %s192 = scalar_lea.hbm %s0, %s191
          %s194 = sshll.u32 1, 14
          %s195 = sxor.u32 4294967295, %s194
          %s197 = sld [smem:[#allocation0]]
          %s198 = sadd.s32 2, %s197
          %s200 = sshll.u32 7, 26
          %s201 = sxor.u32 4294967295, %s200
          %s202 = sand.u32 0, %s201
          %s203 = sshll.u32 %s198, 26
          %s204 = sor.u32 %s202, %s203
          %s205 = sshll.u32 %s184, 4
          %s206 = int_to_ptr.vmem [resolvable:$true] %s205
          %212 = sst [smem:[#allocation7]] 1024
          %s213 = scalar_lea.smem [#allocation7], 1
          %214 = sst [smem:[%s213]] 512
          %s215 = scalar_lea.smem [#allocation7], 2
          %216 = sst [smem:[%s215]] 4
          %s217 = scalar_lea.smem [#allocation7], 3
          %218 = sst [smem:[%s217]] 128
          %s219 = scalar_lea.smem [#allocation7], 4
          %220 = sst [smem:[%s219]] 128
          %s221 = scalar_lea.smem [#allocation7], 5
          %222 = sst [smem:[%s221]] 8
          %224 = dma.general %s192, 2048, %s206, %s181, [#allocation6], [#allocation7], %s204, 0
        $region28: #{tpu_custom_call.1} parent=23 // pred_fallthru
          _
        // Predicated region
        $region29: #{tpu_custom_call.1} parent=23 // pred_check
          %p225 = pneg %p76
        $region30: #{tpu_custom_call.1} parent=23 // pred_check_branch
          %227 = sbr.rel (%p225) target = $region32
        $region31: #{tpu_custom_call.1} parent=23 // pred_region
          %p228 = scmp.lt.s32.totalorder %s23, 1
          %s229 = scalar_select %p228, %s23, 1
          %s230 = smul.addr %s229, 8
          %s231 = smul.addr %s230, 8
          %s232 = scalar_lea.vmem %s1, %s231
        $region32: #{tpu_custom_call.1} parent=23 // pred_fallthru
          _
      $region24: #{tpu_custom_call.1} parent=5 // pred_fallthru
        _
      %p233 = scmp.le.s32.totalorder 1, %s16
      %p234 = scmp.lt.s32.totalorder %s16, 5
      %p235 = pnand %p233, %p234
      %p236 = pneg %p235
      // Predicated region
      $region33: #{tpu_custom_call.1} parent=5 // pred_check
        _
      $region34: #{tpu_custom_call.1} parent=5 // pred_check_branch
        %238 = sbr.rel (%p235) target = $region36
      $region35: #{tpu_custom_call.1} parent=5 // pred_region
        %s239 = ssub.s32 %s16, 1
        %s240 = sand.u32 %s43, 1
        %s241 = scalar_lea.sflag [#allocation3], %s240
        %s242 = sand.u32 %s43, 1
        %s243 = smul.addr %s242, 128
        %s244 = scalar_lea.vmem [#allocation2], %s243
        // Predicated region
        $region37: #{tpu_custom_call.1} parent=35 // pred_check
          %p245 = pneg %p56
        $region38: #{tpu_custom_call.1} parent=35 // pred_check_branch
          %247 = sbr.rel (%p245) target = $region40
        $region39: #{tpu_custom_call.1} parent=35 // pred_region
          %248 = dma.done %s241, 2048
        $region40: #{tpu_custom_call.1} parent=35 // pred_fallthru
          _
        %s249 = sand.u32 %s43, 1
        %s250 = scalar_lea.sflag [#allocation3], %s249
        %s251 = sand.u32 %s43, 1
        %s252 = smul.addr %s251, 128
        %s253 = scalar_lea.vmem [#allocation2], %s252
        %p254 = pneg %p56
        %p255 = pneg %p53
        %p256 = scmp.lt.s32.totalorder %s25, 1
        %s257 = scalar_select %p256, %s25, 1
        %s258 = smul.addr %s257, 8
        %s259 = smul.addr %s258, 8
        %s260 = scalar_lea.vmem %s1, %s259
        %p261 = pneg %p82
        %p262 = pneg %p79
        %p263 = pneg %p103
        %p264 = pneg %p100
        %p265 = pneg %p124
        %p266 = pneg %p121
        %p267 = pneg %p152
        %p268 = pneg %p149
        %s269 = sand.u32 %s139, 1
        %s270 = scalar_lea.sflag [#allocation4], %s269
        %s271 = sand.u32 %s139, 1
        %s272 = smul.addr %s271, 128
        %s273 = scalar_lea.vmem [#allocation5], %s272
        %s274 = smul.u32 4, %s26
        %p275 = scmp.lt.s32.totalorder %s25, 1
        %s276 = scalar_select %p275, %s25, 1
        %s277 = smul.addr %s276, 8
        %s278 = smul.addr %s277, 8
        %s279 = scalar_lea.vmem %s1, %s278
        %s280 = smul.u32 4, %s26
        %s281 = smul.u32 %s26, 4
        %s282 = smul.u32 %s281, 8
        %s283 = scalar_lea.vmem %s279, %s282
        %v284 = vld [vmem:[%s283] sm:$0xff]
        %v285 = vld [vmem:[%s283 + $0x8] sm:$0xff]
        %v286 = vld [vmem:[%s283 + $0x10] sm:$0xff]
        %v287 = vld [vmem:[%s283 + $0x18] sm:$0xff]
        %s288 = ssub.s32 %s281, 2
        %p289 = scmp.gt.s32.totalorder %s288, 0
        %s290 = scalar_select %p289, %s288, 0
        %s291 = smul.u32 %s290, 8
        %s292 = scalar_lea.vmem %s279, %s291
        %v293 = vld [vmem:[%s292] sm:$0xff]
        %v294 = vld [vmem:[%s292 + $0x8] sm:$0xff]
        %s295 = sadd.s32 %s281, 4
        %p296 = scmp.lt.s32.totalorder %s295, 6
        %s297 = scalar_select %p296, %s295, 6
        %s298 = smul.u32 %s297, 8
        %s299 = scalar_lea.vmem %s279, %s298
        %v300 = vld [vmem:[%s299] sm:$0xff]
        %v301 = vld [vmem:[%s299 + $0x8] sm:$0xff]
        %p302 = scmp.gt.s32.totalorder %s26, 0
        %s303 = scalar_select %p302, 1, 0
        %v304 = vstv %s303
        %vm305 = vcmp.eq.s32.totalorder %v304, 1
        %v306 = vsel %vm305, %v293, 0.0
        %v307 = vsel %vm305, %v294, 0.0
        %p308 = scmp.lt.s32.totalorder %s26, 1
        %s309 = scalar_select %p308, 1, 0
        %v310 = vstv %s309
        %vm311 = vcmp.eq.s32.totalorder %v310, 1
        %v312 = vsel %vm311, %v300, 0.0
        %v313 = vsel %vm311, %v301, 0.0
        %v322 = vrot.slane %v306, 7
        %v323 = vrot.slane %v307, 7
        %v324 = vrot.slane %v284, 7
        %v325 = vrot.slane %v285, 7
        %v326 = vrot.slane %v286, 7
        %v327 = vrot.slane %v287, 7
        %v328 = vrot.slane %v312, 7
        %v329 = vrot.slane %v313, 7
        %vm338 = vcmask 1040384
        %v339 = vsel %vm338, 0.0, %v322
        %v340 = vsel %vm338, 0.0, %v323
        %v341 = vsel %vm338, 0.0, %v324
        %v342 = vsel %vm338, 0.0, %v325
        %v343 = vsel %vm338, 0.0, %v326
        %v344 = vsel %vm338, 0.0, %v327
        %v345 = vsel %vm338, 0.0, %v328
        %v346 = vsel %vm338, 0.0, %v329
        %v347 = vsel %vm338, %v322, 0.0
        %v348 = vsel %vm338, %v323, 0.0
        %v349 = vsel %vm338, %v324, 0.0
        %v350 = vsel %vm338, %v325, 0.0
        %v351 = vsel %vm338, %v326, 0.0
        %v352 = vsel %vm338, %v327, 0.0
        %v353 = vsel %vm338, %v328, 0.0
        %v354 = vsel %vm338, %v329, 0.0
        %vm367 = vcmask 1046528
        %v368 = vrot.slane %v339, 1
        %v369 = vrot.slane %v347, 1
        %v370 = vsel %vm367, %v368, %v369
        %v371 = vrot.slane %v340, 1
        %v372 = vrot.slane %v348, 1
        %v373 = vsel %vm367, %v371, %v372
        %v374 = vrot.slane %v341, 1
        %v375 = vrot.slane %v349, 1
        %v376 = vsel %vm367, %v374, %v375
        %v377 = vrot.slane %v342, 1
        %v378 = vrot.slane %v350, 1
        %v379 = vsel %vm367, %v377, %v378
        %v380 = vrot.slane %v343, 1
        %v381 = vrot.slane %v351, 1
        %v382 = vsel %vm367, %v380, %v381
        %v383 = vrot.slane %v344, 1
        %v384 = vrot.slane %v352, 1
        %v385 = vsel %vm367, %v383, %v384
        %386 = vrot.lane.b32.xlu0 %v370, 4
        %v387 = vpop.permute.xlu0 %386
        %388 = vrot.lane.b32.xlu0 %v373, 4
        %v389 = vpop.permute.xlu0 %388
        %390 = vrot.lane.b32.xlu0 %v376, 4
        %v391 = vpop.permute.xlu0 %390
        %392 = vrot.lane.b32.xlu0 %v379, 4
        %v393 = vpop.permute.xlu0 %392
        %394 = vrot.lane.b32.xlu0 %v382, 4
        %v395 = vpop.permute.xlu0 %394
        %396 = vrot.lane.b32.xlu0 %v385, 4
        %v397 = vpop.permute.xlu0 %396
        %vm404 = vcmask 1045504
        %v405 = vrot.slane %v339, 2
        %v406 = vrot.slane %v347, 2
        %v407 = vsel %vm404, %v405, %v406
        %v408 = vrot.slane %v340, 2
        %v409 = vrot.slane %v348, 2
        %v410 = vsel %vm404, %v408, %v409
        %v411 = vrot.slane %v341, 2
        %v412 = vrot.slane %v349, 2
        %v413 = vsel %vm404, %v411, %v412
        %v414 = vrot.slane %v342, 2
        %v415 = vrot.slane %v350, 2
        %v416 = vsel %vm404, %v414, %v415
        %v417 = vrot.slane %v343, 2
        %v418 = vrot.slane %v351, 2
        %v419 = vsel %vm404, %v417, %v418
        %v420 = vrot.slane %v344, 2
        %v421 = vrot.slane %v352, 2
        %v422 = vsel %vm404, %v420, %v421
        %423 = vrot.lane.b32.xlu0 %v407, 8
        %v424 = vpop.permute.xlu0 %423
        %425 = vrot.lane.b32.xlu0 %v410, 8
        %v426 = vpop.permute.xlu0 %425
        %427 = vrot.lane.b32.xlu0 %v413, 8
        %v428 = vpop.permute.xlu0 %427
        %429 = vrot.lane.b32.xlu0 %v416, 8
        %v430 = vpop.permute.xlu0 %429
        %431 = vrot.lane.b32.xlu0 %v419, 8
        %v432 = vpop.permute.xlu0 %431
        %433 = vrot.lane.b32.xlu0 %v422, 8
        %v434 = vpop.permute.xlu0 %433
        %442 = vrot.lane.b32.xlu0 %v340, 12
        %v443 = vpop.permute.xlu0 %442
        %444 = vrot.lane.b32.xlu0 %v341, 12
        %v445 = vpop.permute.xlu0 %444
        %446 = vrot.lane.b32.xlu0 %v342, 12
        %v447 = vpop.permute.xlu0 %446
        %448 = vrot.lane.b32.xlu0 %v343, 12
        %v449 = vpop.permute.xlu0 %448
        %450 = vrot.lane.b32.xlu0 %v344, 12
        %v451 = vpop.permute.xlu0 %450
        %452 = vrot.lane.b32.xlu0 %v345, 12
        %v453 = vpop.permute.xlu0 %452
        %v461 = vrot.slane %v345, 1
        %v462 = vrot.slane %v353, 1
        %v463 = vsel %vm367, %v461, %v462
        %464 = vrot.lane.b32.xlu0 %v373, 16
        %v465 = vpop.permute.xlu0 %464
        %466 = vrot.lane.b32.xlu0 %v376, 16
        %v467 = vpop.permute.xlu0 %466
        %468 = vrot.lane.b32.xlu0 %v379, 16
        %v469 = vpop.permute.xlu0 %468
        %470 = vrot.lane.b32.xlu0 %v382, 16
        %v471 = vpop.permute.xlu0 %470
        %472 = vrot.lane.b32.xlu0 %v385, 16
        %v473 = vpop.permute.xlu0 %472
        %474 = vrot.lane.b32.xlu0 %v463, 16
        %v475 = vpop.permute.xlu0 %474
        %v482 = vrot.slane %v345, 2
        %v483 = vrot.slane %v353, 2
        %v484 = vsel %vm404, %v482, %v483
        %485 = vrot.lane.b32.xlu0 %v410, 20
        %v486 = vpop.permute.xlu0 %485
        %487 = vrot.lane.b32.xlu0 %v413, 20
        %v488 = vpop.permute.xlu0 %487
        %489 = vrot.lane.b32.xlu0 %v416, 20
        %v490 = vpop.permute.xlu0 %489
        %491 = vrot.lane.b32.xlu0 %v419, 20
        %v492 = vpop.permute.xlu0 %491
        %493 = vrot.lane.b32.xlu0 %v422, 20
        %v494 = vpop.permute.xlu0 %493
        %495 = vrot.lane.b32.xlu0 %v484, 20
        %v496 = vpop.permute.xlu0 %495
        %504 = vrot.lane.b32.xlu0 %v341, 24
        %v505 = vpop.permute.xlu0 %504
        %506 = vrot.lane.b32.xlu0 %v342, 24
        %v507 = vpop.permute.xlu0 %506
        %508 = vrot.lane.b32.xlu0 %v343, 24
        %v509 = vpop.permute.xlu0 %508
        %510 = vrot.lane.b32.xlu0 %v344, 24
        %v511 = vpop.permute.xlu0 %510
        %512 = vrot.lane.b32.xlu0 %v345, 24
        %v513 = vpop.permute.xlu0 %512
        %514 = vrot.lane.b32.xlu0 %v346, 24
        %v515 = vpop.permute.xlu0 %514
        %v523 = vrot.slane %v346, 1
        %v524 = vrot.slane %v354, 1
        %v525 = vsel %vm367, %v523, %v524
        %526 = vrot.lane.b32.xlu0 %v376, 28
        %v527 = vpop.permute.xlu0 %526
        %528 = vrot.lane.b32.xlu0 %v379, 28
        %v529 = vpop.permute.xlu0 %528
        %530 = vrot.lane.b32.xlu0 %v382, 28
        %v531 = vpop.permute.xlu0 %530
        %532 = vrot.lane.b32.xlu0 %v385, 28
        %v533 = vpop.permute.xlu0 %532
        %534 = vrot.lane.b32.xlu0 %v463, 28
        %v535 = vpop.permute.xlu0 %534
        %536 = vrot.lane.b32.xlu0 %v525, 28
        %v537 = vpop.permute.xlu0 %536
        %v544 = vrot.slane %v346, 2
        %v545 = vrot.slane %v354, 2
        %v546 = vsel %vm404, %v544, %v545
        %547 = vrot.lane.b32.xlu0 %v413, 32
        %v548 = vpop.permute.xlu0 %547
        %549 = vrot.lane.b32.xlu0 %v416, 32
        %v550 = vpop.permute.xlu0 %549
        %551 = vrot.lane.b32.xlu0 %v419, 32
        %v552 = vpop.permute.xlu0 %551
        %553 = vrot.lane.b32.xlu0 %v422, 32
        %v554 = vpop.permute.xlu0 %553
        %555 = vrot.lane.b32.xlu0 %v484, 32
        %v556 = vpop.permute.xlu0 %555
        %557 = vrot.lane.b32.xlu0 %v546, 32
        %v558 = vpop.permute.xlu0 %557
        %vm565 = vcmask 31744
        %v566 = vsel %vm565, %v339, %v387
        %v567 = vsel %vm565, %v340, %v389
        %v568 = vsel %vm565, %v341, %v391
        %v569 = vsel %vm565, %v342, %v393
        %v570 = vsel %vm565, %v343, %v395
        %v571 = vsel %vm565, %v344, %v397
        %vm572 = vcmask 64512
        %v573 = vsel %vm572, %v566, %v424
        %v574 = vsel %vm572, %v567, %v426
        %v575 = vsel %vm572, %v568, %v428
        %v576 = vsel %vm572, %v569, %v430
        %v577 = vsel %vm572, %v570, %v432
        %v578 = vsel %vm572, %v571, %v434
        %vm579 = vcmask 97280
        %v580 = vsel %vm579, %v573, %v443
        %v581 = vsel %vm579, %v574, %v445
        %v582 = vsel %vm579, %v575, %v447
        %v583 = vsel %vm579, %v576, %v449
        %v584 = vsel %vm579, %v577, %v451
        %v585 = vsel %vm579, %v578, %v453
        %vm586 = vcmask 130048
        %v587 = vsel %vm586, %v580, %v465
        %v588 = vsel %vm586, %v581, %v467
        %v589 = vsel %vm586, %v582, %v469
        %v590 = vsel %vm586, %v583, %v471
        %v591 = vsel %vm586, %v584, %v473
        %v592 = vsel %vm586, %v585, %v475
        %vm593 = vcmask 162816
        %v594 = vsel %vm593, %v587, %v486
        %v595 = vsel %vm593, %v588, %v488
        %v596 = vsel %vm593, %v589, %v490
        %v597 = vsel %vm593, %v590, %v492
        %v598 = vsel %vm593, %v591, %v494
        %v599 = vsel %vm593, %v592, %v496
        %vm600 = vcmask 195584
        %v601 = vsel %vm600, %v594, %v505
        %v602 = vsel %vm600, %v595, %v507
        %v603 = vsel %vm600, %v596, %v509
        %v604 = vsel %vm600, %v597, %v511
        %v605 = vsel %vm600, %v598, %v513
        %v606 = vsel %vm600, %v599, %v515
        %vm607 = vcmask 228352
        %v608 = vsel %vm607, %v601, %v527
        %v609 = vsel %vm607, %v602, %v529
        %v610 = vsel %vm607, %v603, %v531
        %v611 = vsel %vm607, %v604, %v533
        %v612 = vsel %vm607, %v605, %v535
        %v613 = vsel %vm607, %v606, %v537
        %vm614 = vcmask 261120
        %v615 = vsel %vm614, %v608, %v548
        %v616 = vsel %vm614, %v609, %v550
        %v617 = vsel %vm614, %v610, %v552
        %v618 = vsel %vm614, %v611, %v554
        %v619 = vsel %vm614, %v612, %v556
        %v620 = vsel %vm614, %v613, %v558
        %v621 = vld [vmem:[%s2] sm:$0xff]
        %v622 = vld [vmem:[%s2 + $0x8] sm:$0xff]
        %v623 = vld [vmem:[%s2 + $0x10] sm:$0xff]
        %v624 = vld [vmem:[%s2 + $0x18] sm:$0xff]
        %v625 = vld [vmem:[%s2 + $0x20] sm:$0xf]
        %v626 = vld [vmem:[%s3] sm:$0x1]
        %v628 = vlaneseq
        %v629 = vshrl.u32 %v628, 7
        %v630 = vsub.s32 0, %v629
        %v631 = vrot.slane %v626, %v630
        %vm633 = vcmask 293888
        %v635 = vsel %vm633, %v615, 0
        %v638 = vsel %vm633, %v616, 0
        %v641 = vsel %vm633, %v617, 0
        %v644 = vsel %vm633, %v618, 0
        %v647 = vsel %vm633, %v619, 0
        %v650 = vsel %vm633, %v620, 0
        %vm652 = vcmask 1043456
        %v654 = vsel %vm652, %v625, 0
        %656 = vmatprep.subr.mxu0 0.0
        %657 = vmatpush1.msra.mxu0 %v621
        %658 = vmatprep.subr.mxu0 0.0
        %659 = vmatpush1.msra.mxu0 %v622
        %660 = vmatprep.subr.mxu0 0.0
        %661 = vmatpush1.msra.mxu0 %v623
        %662 = vmatprep.subr.mxu0 0.0
        %663 = vmatpush1.msra.mxu0 %v624
        %664 = vmatprep.subr.mxu0 0.0
        %665 = vmatpush1.msra.mxu0 %v654
        %666 = vmatprep.subr.mxu0 0.0
        %667 = vmatpush1.msra.mxu0 0.0
        %668 = vmatprep.subr.mxu0 0.0
        %669 = vmatpush1.msra.mxu0 0.0
        %670 = vmatprep.subr.mxu0 0.0
        %671 = vmatpush1.msra.mxu0 0.0
        %672 = vmatprep.subr.mxu0 0.0
        %673 = vmatpush1.msra.mxu0 0.0
        %674 = vmatprep.subr.mxu0 0.0
        %675 = vmatpush1.msra.mxu0 0.0
        %676 = vmatprep.subr.mxu0 0.0
        %677 = vmatpush1.msra.mxu0 0.0
        %678 = vmatprep.subr.mxu0 0.0
        %679 = vmatpush1.msra.mxu0 0.0
        %680 = vmatprep.subr.mxu0 0.0
        %681 = vmatpush1.msra.mxu0 0.0
        %682 = vmatprep.subr.mxu0 0.0
        %683 = vmatpush1.msra.mxu0 0.0
        %684 = vmatprep.subr.mxu0 0.0
        %685 = vmatpush1.msra.mxu0 0.0
        %686 = vmatprep.subr.mxu0 0.0
        %687 = vmatpush1.msra.mxu0 0.0
        %688 = vmatprep.subr.mxu0 0.0
        %689 = vmatpush1.msra.mxu0 0.0
        %690 = vmatprep.subr.mxu0 0.0
        %691 = vmatpush1.msra.mxu0 0.0
        %692 = vmatprep.subr.mxu0 0.0
        %693 = vmatpush1.msra.mxu0 0.0
        %694 = vmatprep.subr.mxu0 0.0
        %695 = vmatpush1.msra.mxu0 0.0
        %696 = vmatprep.subr.mxu0 0.0
        %697 = vmatpush1.msra.mxu0 0.0
        %698 = vmatprep.subr.mxu0 0.0
        %699 = vmatpush1.msra.mxu0 0.0
        %700 = vmatprep.subr.mxu0 0.0
        %701 = vmatpush1.msra.mxu0 0.0
        %702 = vmatprep.subr.mxu0 0.0
        %703 = vmatpush1.msra.mxu0 0.0
        %704 = vmatprep.subr.mxu0 0.0
        %705 = vmatpush1.msra.mxu0 0.0
        %706 = vmatprep.subr.mxu0 0.0
        %707 = vmatpush1.msra.mxu0 0.0
        %708 = vmatprep.subr.mxu0 0.0
        %709 = vmatpush1.msra.mxu0 0.0
        %710 = vmatprep.subr.mxu0 0.0
        %711 = vmatpush1.msra.mxu0 0.0
        %712 = vmatprep.subr.mxu0 0.0
        %713 = vmatpush1.msra.mxu0 0.0
        %714 = vmatprep.subr.mxu0 0.0
        %715 = vmatpush1.msra.mxu0 0.0
        %716 = vmatprep.subr.mxu0 0.0
        %717 = vmatpush1.msra.mxu0 0.0
        %718 = vmatprep.subr.mxu0 0.0
        %719 = vmatpush1.msra.mxu0 0.0
        %720 = vmatprep.mubr.f32.mxu0 0.0
        %721 = vmatmul.mubr.f32.gmra.mrb[0].mxu0 %v635
        %v722 = vpop.f32.mrb[0].mxu0
        %v723 = vadd.f32 %v631, %v722
        %v724 = vpop.f32.mrb[0].mxu0
        %725 = vmatprep.mubr.f32.mxu0 0.0
        %726 = vmatmul.mubr.f32.gmra.mrb[0].mxu0 %v638
        %v727 = vpop.f32.mrb[0].mxu0
        %v728 = vadd.f32 %v631, %v727
        %v729 = vpop.f32.mrb[0].mxu0
        %730 = vmatprep.mubr.f32.mxu0 0.0
        %731 = vmatmul.mubr.f32.gmra.mrb[0].mxu0 %v641
        %v732 = vpop.f32.mrb[0].mxu0
        %v733 = vadd.f32 %v631, %v732
        %v734 = vpop.f32.mrb[0].mxu0
        %735 = vmatprep.mubr.f32.mxu0 0.0
        %736 = vmatmul.mubr.f32.gmra.mrb[0].mxu0 %v644
        %v737 = vpop.f32.mrb[0].mxu0
        %v738 = vadd.f32 %v631, %v737
        %v739 = vpop.f32.mrb[0].mxu0
        %740 = vmatprep.mubr.f32.mxu0 0.0
        %741 = vmatmul.mubr.f32.gmra.mrb[0].mxu0 %v647
        %v742 = vpop.f32.mrb[0].mxu0
        %v743 = vadd.f32 %v631, %v742
        %v744 = vpop.f32.mrb[0].mxu0
        %745 = vmatprep.mubr.f32.mxu0 0.0
        %746 = vmatmul.mubr.f32.gmra.mrb[0].mxu0 %v650
        %v747 = vpop.f32.mrb[0].mxu0
        %v748 = vadd.f32 %v631, %v747
        %v749 = vpop.f32.mrb[0].mxu0
        %750 = vdwg.mxu0
        %p751 = scmp.eq.s32.totalorder %s26, 0
        %s752 = scalar_select %p751, 1, 0
        %v753 = vstv %s752
        %vm754 = vcmp.eq.s32.totalorder %v753, 1
        %v755 = vsel %vm754, %v728, %v723
        %p756 = scmp.eq.s32.totalorder %s26, 1
        %s757 = scalar_select %p756, 1, 0
        %v758 = vstv %s757
        %vm759 = vcmp.eq.s32.totalorder %v758, 1
        %v760 = vsel %vm759, %v743, %v748
        %v761 = vmul.f32 %v728, 0.75
        %v762 = vmul.f32 %v733, 0.75
        %v763 = vmul.f32 %v738, 0.75
        %v764 = vmul.f32 %v743, 0.75
        %v765 = vmul.f32 %v755, 0.25
        %v766 = vmul.f32 %v728, 0.25
        %v767 = vmul.f32 %v733, 0.25
        %v768 = vmul.f32 %v738, 0.25
        %v769 = vadd.f32 %v761, %v765
        %v770 = vadd.f32 %v762, %v766
        %v771 = vadd.f32 %v763, %v767
        %v772 = vadd.f32 %v764, %v768
        %v773 = vmul.f32 %v743, 0.25
        %v774 = vmul.f32 %v760, 0.25
        %v775 = vadd.f32 %v761, %v767
        %v776 = vadd.f32 %v762, %v768
        %v777 = vadd.f32 %v763, %v773
        %v778 = vadd.f32 %v764, %v774
        %v783 = vrot.slane %v769, 7
        %v784 = vrot.slane %v770, 7
        %v785 = vrot.slane %v771, 7
        %v786 = vrot.slane %v772, 7
        %v791 = vsel %vm338, %v769, %v783
        %v792 = vsel %vm338, %v770, %v784
        %v793 = vsel %vm338, %v771, %v785
        %v794 = vsel %vm338, %v772, %v786
        %v795 = vrot.slane %v769, 1
        %v796 = vrot.slane %v770, 1
        %v797 = vrot.slane %v771, 1
        %v798 = vrot.slane %v772, 1
        %v803 = vsel %vm367, %v795, %v769
        %v804 = vsel %vm367, %v796, %v770
        %v805 = vsel %vm367, %v797, %v771
        %v806 = vsel %vm367, %v798, %v772
        %v807 = vmul.f32 %v769, 0.75
        %v808 = vmul.f32 %v770, 0.75
        %v809 = vmul.f32 %v771, 0.75
        %v810 = vmul.f32 %v772, 0.75
        %v811 = vmul.f32 %v791, 0.25
        %v812 = vmul.f32 %v792, 0.25
        %v813 = vmul.f32 %v793, 0.25
        %v814 = vmul.f32 %v794, 0.25
        %v815 = vadd.f32 %v807, %v811
        %v816 = vadd.f32 %v808, %v812
        %v817 = vadd.f32 %v809, %v813
        %v818 = vadd.f32 %v810, %v814
        %v819 = vmul.f32 %v803, 0.25
        %v820 = vmul.f32 %v804, 0.25
        %v821 = vmul.f32 %v805, 0.25
        %v822 = vmul.f32 %v806, 0.25
        %v823 = vadd.f32 %v807, %v819
        %v824 = vadd.f32 %v808, %v820
        %v825 = vadd.f32 %v809, %v821
        %v826 = vadd.f32 %v810, %v822
        %v831 = vrot.slane %v775, 7
        %v832 = vrot.slane %v776, 7
        %v833 = vrot.slane %v777, 7
        %v834 = vrot.slane %v778, 7
        %v839 = vsel %vm338, %v775, %v831
        %v840 = vsel %vm338, %v776, %v832
        %v841 = vsel %vm338, %v777, %v833
        %v842 = vsel %vm338, %v778, %v834
        %v843 = vrot.slane %v775, 1
        %v844 = vrot.slane %v776, 1
        %v845 = vrot.slane %v777, 1
        %v846 = vrot.slane %v778, 1
        %v851 = vsel %vm367, %v843, %v775
        %v852 = vsel %vm367, %v844, %v776
        %v853 = vsel %vm367, %v845, %v777
        %v854 = vsel %vm367, %v846, %v778
        %v855 = vmul.f32 %v775, 0.75
        %v856 = vmul.f32 %v776, 0.75
        %v857 = vmul.f32 %v777, 0.75
        %v858 = vmul.f32 %v778, 0.75
        %v859 = vmul.f32 %v839, 0.25
        %v860 = vmul.f32 %v840, 0.25
        %v861 = vmul.f32 %v841, 0.25
        %v862 = vmul.f32 %v842, 0.25
        %v863 = vadd.f32 %v855, %v859
        %v864 = vadd.f32 %v856, %v860
        %v865 = vadd.f32 %v857, %v861
        %v866 = vadd.f32 %v858, %v862
        %v867 = vmul.f32 %v851, 0.25
        %v868 = vmul.f32 %v852, 0.25
        %v869 = vmul.f32 %v853, 0.25
        %v870 = vmul.f32 %v854, 0.25
        %v871 = vadd.f32 %v855, %v867
        %v872 = vadd.f32 %v856, %v868
        %v873 = vadd.f32 %v857, %v869
        %v874 = vadd.f32 %v858, %v870
        %v875 = vld [vmem:[%s244] sm:$0xff]
        %v876 = vld [vmem:[%s244 + $0x8] sm:$0xff]
        %v877 = vld [vmem:[%s244 + $0x10] sm:$0xff]
        %v878 = vld [vmem:[%s244 + $0x18] sm:$0xff]
        %v879 = vmul.f32 %v875, %v815
        %v880 = vmul.f32 %v876, %v816
        %v881 = vmul.f32 %v877, %v817
        %v882 = vmul.f32 %v878, %v818
        %883 = vst.msk [vmem:[%s273] sm:$0xff] %vm572, %v879
        %884 = vst.msk [vmem:[%s273 + $0x8] sm:$0xff] %vm572, %v880
        %885 = vst.msk [vmem:[%s273 + $0x10] sm:$0xff] %vm572, %v881
        %886 = vst.msk [vmem:[%s273 + $0x18] sm:$0xff] %vm572, %v882
        %s887 = scalar_lea.vmem %s244, 32 [#allocation2]
        %v888 = vld [vmem:[%s887] sm:$0xff]
        %v889 = vld [vmem:[%s887 + $0x8] sm:$0xff]
        %v890 = vld [vmem:[%s887 + $0x10] sm:$0xff]
        %v891 = vld [vmem:[%s887 + $0x18] sm:$0xff]
        %v892 = vmul.f32 %v888, %v823
        %v893 = vmul.f32 %v889, %v824
        %v894 = vmul.f32 %v890, %v825
        %v895 = vmul.f32 %v891, %v826
        %s896 = scalar_lea.vmem %s273, 32 [#allocation5]
        %897 = vst.msk [vmem:[%s896] sm:$0xff] %vm572, %v892
        %898 = vst.msk [vmem:[%s896 + $0x8] sm:$0xff] %vm572, %v893
        %899 = vst.msk [vmem:[%s896 + $0x10] sm:$0xff] %vm572, %v894
        %900 = vst.msk [vmem:[%s896 + $0x18] sm:$0xff] %vm572, %v895
        %s901 = scalar_lea.vmem %s244, 64 [#allocation2]
        %v902 = vld [vmem:[%s901] sm:$0xff]
        %v903 = vld [vmem:[%s901 + $0x8] sm:$0xff]
        %v904 = vld [vmem:[%s901 + $0x10] sm:$0xff]
        %v905 = vld [vmem:[%s901 + $0x18] sm:$0xff]
        %v906 = vmul.f32 %v902, %v863
        %v907 = vmul.f32 %v903, %v864
        %v908 = vmul.f32 %v904, %v865
        %v909 = vmul.f32 %v905, %v866
        %s910 = scalar_lea.vmem %s273, 64 [#allocation5]
        %911 = vst.msk [vmem:[%s910] sm:$0xff] %vm572, %v906
        %912 = vst.msk [vmem:[%s910 + $0x8] sm:$0xff] %vm572, %v907
        %913 = vst.msk [vmem:[%s910 + $0x10] sm:$0xff] %vm572, %v908
        %914 = vst.msk [vmem:[%s910 + $0x18] sm:$0xff] %vm572, %v909
        %s915 = scalar_lea.vmem %s244, 96 [#allocation2]
        %v916 = vld [vmem:[%s915] sm:$0xff]
        %v917 = vld [vmem:[%s915 + $0x8] sm:$0xff]
        %v918 = vld [vmem:[%s915 + $0x10] sm:$0xff]
        %v919 = vld [vmem:[%s915 + $0x18] sm:$0xff]
        %v920 = vmul.f32 %v916, %v871
        %v921 = vmul.f32 %v917, %v872
        %v922 = vmul.f32 %v918, %v873
        %v923 = vmul.f32 %v919, %v874
        %s924 = scalar_lea.vmem %s273, 96 [#allocation5]
        %925 = vst.msk [vmem:[%s924] sm:$0xff] %vm572, %v920
        %926 = vst.msk [vmem:[%s924 + $0x8] sm:$0xff] %vm572, %v921
        %927 = vst.msk [vmem:[%s924 + $0x10] sm:$0xff] %vm572, %v922
        %928 = vst.msk [vmem:[%s924 + $0x18] sm:$0xff] %vm572, %v923
        %s929 = sand.u32 %s139, 1
        %s930 = scalar_lea.sflag [#allocation4], %s929
        %s931 = sand.u32 %s139, 1
        %s932 = smul.addr %s931, 128
        %s933 = scalar_lea.vmem [#allocation5], %s932
        // Predicated region
        $region41: #{tpu_custom_call.1} parent=35 // pred_check
          %p934 = pneg %p149
        $region42: #{tpu_custom_call.1} parent=35 // pred_check_branch
          %936 = sbr.rel (%p934) target = $region44
        $region43: #{tpu_custom_call.1} parent=35 // pred_region
          #allocation9 [shape = 'u32[6]{0}', space=smem, size = 0x18, scoped, tag = 'DMA stride descriptor']
          %s937 = smul.u32 4, %s26
          %s939 = ssub.s32 2048, 2048
          %940 = vsyncadd %s930, %s939
          %s941 = smul.addr %s25, 32
          %s942 = sadd.s32 %s937, %s941
          %s943 = smul.addr %s942, 128
          %s944 = scalar_lea.hbm %s4, %s943
          %s946 = sshll.u32 1, 14
          %s947 = sxor.u32 4294967295, %s946
          %s950 = sshll.u32 7, 18
          %s951 = sxor.u32 4294967295, %s950
          %s952 = sand.u32 0, %s951
          %s954 = sor.u32 %s952, 0
          %s956 = sshll.u32 3, 24
          %s957 = sxor.u32 4294967295, %s956
          %s958 = sand.u32 %s954, %s957
          %s960 = sor.u32 %s958, 0
          %s961 = sshll.u32 %s933, 4
          %s962 = int_to_ptr.vmem [resolvable:$true] %s961
          %968 = sst [smem:[#allocation9]] 512
          %s969 = scalar_lea.smem [#allocation9], 1
          %970 = sst [smem:[%s969]] 1024
          %s971 = scalar_lea.smem [#allocation9], 2
          %972 = sst [smem:[%s971]] 4
          %s973 = scalar_lea.smem [#allocation9], 3
          %974 = sst [smem:[%s973]] 128
          %s975 = scalar_lea.smem [#allocation9], 4
          %976 = sst [smem:[%s975]] 128
          %s977 = scalar_lea.smem [#allocation9], 5
          %978 = sst [smem:[%s977]] 8
          %980 = dma.general %s962, 2048, %s944, %s930, [#allocation8], [#allocation9], %s960, 0
        $region44: #{tpu_custom_call.1} parent=35 // pred_fallthru
          _
      $region36: #{tpu_custom_call.1} parent=5 // pred_fallthru
        _
      %p981 = scmp.le.s32.totalorder 2, %s16
      // Predicated region
      $region45: #{tpu_custom_call.1} parent=5 // pred_check
        %p982 = pneg %p981
      $region46: #{tpu_custom_call.1} parent=5 // pred_check_branch
        %984 = sbr.rel (%p982) target = $region48
      $region47: #{tpu_custom_call.1} parent=5 // pred_region
        %s985 = ssub.s32 %s16, 2
        // Predicated region
        $region49: #{tpu_custom_call.1} parent=47 // pred_check
          %p986 = pneg %p155
        $region50: #{tpu_custom_call.1} parent=47 // pred_check_branch
          %988 = sbr.rel (%p986) target = $region52
        $region51: #{tpu_custom_call.1} parent=47 // pred_region
          %s989 = sand.u32 %s140, 1
          %s990 = scalar_lea.sflag [#allocation4], %s989
          %s991 = sand.u32 %s140, 1
          %s992 = smul.addr %s991, 128
          %s993 = scalar_lea.vmem [#allocation5], %s992
          %994 = dma.done %s990, 2048
        $region52: #{tpu_custom_call.1} parent=47 // pred_fallthru
          _
      $region48: #{tpu_custom_call.1} parent=5 // pred_fallthru
        _
    $region6: #{tpu_custom_call.1} parent=1 // loop_footer
      %s20 = sadd.s32 1, %s16
    $region7: #{tpu_custom_call.1} parent=1 // loop_footer_branch
      %15 = sbr.rel target = $region3
    $region8: #{tpu_custom_call.1} parent=1 // loop_exit
      _
    %995 = vsyncpa [#allocation3], 1
    %s996 = scalar_lea.sflag [#allocation3], 1
    %997 = vsyncpa %s996, 1
    %998 = vsyncpa [#allocation4], 1
    %s999 = scalar_lea.sflag [#allocation4], 1
    %1000 = vsyncpa %s999, 1

</llo_original>
